<compile_context>
chip_gen: v7x
topology: tpu7x:2x2x1
jax: 0.10.0
libtpu: 0.0.40
codegen_flags: <defaults>
</compile_context>

<pallas_src>
from typing import NamedTuple, Optional

import jax
import jax.numpy as jnp
from jax.experimental import pallas as pl
from jax.experimental.pallas import tpu as pltpu


def _round_up(x, m):
    return ((x + m - 1) // m) * m


# ---------------------------------------------------------------------------
# Kernels
# ---------------------------------------------------------------------------
def _bayes_linear_kernel_bias(x_ref, w_ref, b_ref, o_ref, acc_ref):
    # x_ref: (tm, tk)  w_ref: (tk, tn)  b_ref: (1, tn)  o_ref: (tm, tn)  acc: f32
    k = pl.program_id(2)
    prod = jnp.dot(x_ref[...], w_ref[...], preferred_element_type=jnp.float32)

    @pl.when(k == 0)
    def _first():                       # write instead of zero-init + accumulate
        acc_ref[...] = prod

    @pl.when(k > 0)
    def _accumulate():
        acc_ref[...] += prod

    @pl.when(k == pl.num_programs(2) - 1)
    def _finalize():
        o_ref[...] = (acc_ref[...] + b_ref[...].astype(jnp.float32)).astype(o_ref.dtype)


def _bayes_linear_kernel_nobias(x_ref, w_ref, o_ref, acc_ref):
    k = pl.program_id(2)
    prod = jnp.dot(x_ref[...], w_ref[...], preferred_element_type=jnp.float32)

    @pl.when(k == 0)
    def _first():
        acc_ref[...] = prod

    @pl.when(k > 0)
    def _accumulate():
        acc_ref[...] += prod

    @pl.when(k == pl.num_programs(2) - 1)
    def _finalize():
        o_ref[...] = acc_ref[...].astype(o_ref.dtype)


# ---------------------------------------------------------------------------
# Parameter preparation (done ONCE, at module-setup time)
# ---------------------------------------------------------------------------
class BayesLinearParams(NamedTuple):
    w_t: jax.Array                 # [Kp, OUT]  pre-transposed, zero-padded along K
    bias: Optional[jax.Array]      # [1, OUT] float32, or None
    in_features: int               # original K (unpadded)
    tk: int                        # reduction tile; divides Kp exactly


def prepare_bayes_linear(w_mu, bias_mu=None, *, tk=512, compute_dtype=None):
    """Cache W_mu as a lane-dense [K, OUT] MXU RHS, K zero-padded to a tile multiple.

    Call once when the parameters are created/updated, NOT per forward.
    compute_dtype=jnp.bfloat16 halves HBM bytes and unlocks the bf16 MXU rate
    (accumulation stays f32 in the kernel).
    """
    w_mu = jnp.asarray(w_mu)
    out_features, in_features = w_mu.shape

    tk_eff = max(128, min(tk, _round_up(in_features, 128)))
    k_padded = _round_up(in_features, tk_eff)

    w_t = w_mu.T                                        # [K, OUT] lane-dense RHS
    if compute_dtype is not None:
        w_t = w_t.astype(compute_dtype)
    if k_padded != in_features:                         # zero-pad ONLY the reduction axis
        w_t = jnp.pad(w_t, ((0, k_padded - in_features), (0, 0)))

    bias2d = None
    if bias_mu is not None:
        bias2d = jnp.asarray(bias_mu).astype(jnp.float32).reshape(1, out_features)

    return BayesLinearParams(w_t=w_t, bias=bias2d, in_features=in_features, tk=tk_eff)


# ---------------------------------------------------------------------------
# Forward
# ---------------------------------------------------------------------------
def bayes_linear_forward(x, params: BayesLinearParams, *, tm=512, tn=1024,
                         extra_weight_buffering=False):
    """inputs [N, K] @ W_mu.T [K, OUT] + bias_mu [OUT] -> [N, OUT]."""
    n_rows, k_in = x.shape
    k_padded, out_features = params.w_t.shape
    assert k_in == params.in_features, "in_features mismatch between inputs and W_mu"
    tk = params.tk
    out_dtype = x.dtype

    # Match the cached weight's compute dtype (e.g. bf16); accumulation stays f32.
    compute_dtype = params.w_t.dtype
    if x.dtype != compute_dtype:
        x = x.astype(compute_dtype)

    # Min sublane tile: 8 for 32-bit dtypes, 16 for sub-32-bit (bf16) packing.
    sub = 8 if jnp.dtype(compute_dtype).itemsize == 4 else 16
    tm = max(sub, min(tm, _round_up(n_rows, sub)))        # row tile
    tn = max(128, min(tn, _round_up(out_features, 128)))  # lane-dense output tile

    # v7x megacore: ensure >=2 blocks along at least one "parallel" axis so both
    # TensorCores get work (no-op on v5e/v6e single-core chips).
    if pl.cdiv(n_rows, tm) == 1 and pl.cdiv(out_features, tn) == 1:
        if out_features > 128:
            tn = max(128, _round_up(pl.cdiv(out_features, 2), 128))
        elif n_rows > sub:
            tm = max(sub, _round_up(pl.cdiv(n_rows, 2), sub))

    # Only the reduction axis K needs explicit zero padding (N/OUT edges are masked
    # by Pallas and never reach the (N, OUT) output).  For K % tk == 0 this is free.
    if k_padded != k_in:
        x = jnp.pad(x, ((0, 0), (0, k_padded - k_in)))

    grid = (pl.cdiv(n_rows, tm), pl.cdiv(out_features, tn), k_padded // tk)

    # Optional 3-deep pipelining of the streamed weight (small-batch regime).
    w_spec_kwargs = {"pipeline_mode": pl.Buffered(3)} if extra_weight_buffering else {}
    w_spec = pl.BlockSpec((tk, tn), lambda i, j, k: (k, j), **w_spec_kwargs)

    in_specs = [pl.BlockSpec((tm, tk), lambda i, j, k: (i, k)), w_spec]
    operands = [x, params.w_t]
    if params.bias is not None:
        in_specs.append(pl.BlockSpec((1, tn), lambda i, j, k: (0, j)))
        operands.append(params.bias)
        kernel = _bayes_linear_kernel_bias
    else:
        kernel = _bayes_linear_kernel_nobias

    # VMEM budget from the ACTUAL double-buffered tile bytes (+ accumulator + bias),
    # 1.5x headroom, never below the 32 MiB scoped default, clamped to physical VMEM.
    cd_size = jnp.dtype(compute_dtype).itemsize
    n_wbuf = 3 if extra_weight_buffering else 2
    vmem_bytes = (2 * tm * tk * cd_size                       # input tiles
                  + n_wbuf * tk * tn * cd_size                # weight tiles
                  + 2 * tm * tn * jnp.dtype(out_dtype).itemsize   # output tiles
                  + tm * tn * 4                               # f32 accumulator
                  + (2 * tn * 4 if params.bias is not None else 0))
    vmem_limit = max(int(1.5 * vmem_bytes), 32 * 1024 * 1024)
    try:
        vmem_cap = pltpu.get_tpu_info().vmem_capacity_bytes   # 64 MiB v7x, 128 MiB v5e/v6e
    except Exception:
        vmem_cap = 64 * 1024 * 1024                            # conservative (v7x)
    vmem_limit = min(vmem_limit, (vmem_cap * 7) // 8)

    cost = pl.CostEstimate(
        flops=2 * n_rows * k_padded * out_features,
        transcendentals=0,
        bytes_accessed=cd_size * (n_rows * k_padded + k_padded * out_features)
        + jnp.dtype(out_dtype).itemsize * n_rows * out_features,
    )

    return pl.pallas_call(
        kernel,
        out_shape=jax.ShapeDtypeStruct((n_rows, out_features), out_dtype),
        grid_spec=pltpu.PrefetchScalarGridSpec(
            num_scalar_prefetch=0,
            grid=grid,
            in_specs=in_specs,
            out_specs=pl.BlockSpec((tm, tn), lambda i, j, k: (i, j)),
            scratch_shapes=[pltpu.VMEM((tm, tn), jnp.float32)],
        ),
        compiler_params=pltpu.CompilerParams(
            dimension_semantics=("parallel", "parallel", "arbitrary"),
            vmem_limit_bytes=vmem_limit,
        ),
        cost_estimate=cost,
    )(*operands)


def bayes_linear_apply(x, w_mu, bias_mu=None, *, tk=512, compute_dtype=None, **kwargs):
    """One-shot convenience.  Prefer prepare_bayes_linear() once + bayes_linear_forward()."""
    params = prepare_bayes_linear(w_mu, bias_mu, tk=tk, compute_dtype=compute_dtype)
    return bayes_linear_forward(x, params, **kwargs)


if __name__ == "__main__":
    key = jax.random.PRNGKey(0)
    keys = jax.random.split(key, 9)

    # --- Case 1: small, nn.Linear-style shapes, f32, with bias -------------------
    N, in_features, out_features = 8, 32, 32
    x = jax.random.normal(keys[0], (N, in_features), dtype=jnp.float32)
    # Deterministic init mirroring init_parameters(): N(0, 0.1).
    w_mu = 0.1 * jax.random.normal(keys[1], (out_features, in_features), dtype=jnp.float32)
    bias_mu = 0.1 * jax.random.normal(keys[2], (out_features,), dtype=jnp.float32)

    params1 = prepare_bayes_linear(w_mu, bias_mu)          # weight cached ONCE
    out = jax.block_until_ready(bayes_linear_forward(x, params1))
    ref = x @ w_mu.T + bias_mu[None, :]
    assert out.shape == (N, out_features)
    assert jnp.allclose(out, ref, atol=1e-5, rtol=1e-5), "mismatch vs reference (case 1)"

    # --- Case 2: ragged shapes (exercise cdiv edge blocks, no N/OUT padding) -----
    N2, in2, out2 = 10, 48, 72
    x2 = jax.random.normal(keys[3], (N2, in2), dtype=jnp.float32)
    w2 = 0.1 * jax.random.normal(keys[4], (out2, in2), dtype=jnp.float32)
    b2 = 0.1 * jax.random.normal(keys[5], (out2,), dtype=jnp.float32)

    params2 = prepare_bayes_linear(w2, b2)
    out2_ = jax.block_until_ready(bayes_linear_forward(x2, params2))
    ref2 = x2 @ w2.T + b2[None, :]
    assert out2_.shape == (N2, out2)
    assert jnp.allclose(out2_, ref2, atol=1e-5, rtol=1e-5), "mismatch vs reference (case 2)"

    # --- Case 3: bf16 operands, no bias, multiple K steps + megacore tile split ---
    N3, in3, out3 = 64, 256, 256
    x3 = jax.random.normal(keys[6], (N3, in3), dtype=jnp.float32)
    w3 = 0.1 * jax.random.normal(keys[7], (out3, in3), dtype=jnp.float32)

    params3 = prepare_bayes_linear(w3, None, tk=128, compute_dtype=jnp.bfloat16)
    out3_ = jax.block_until_ready(bayes_linear_forward(x3, params3))
    ref3 = x3 @ w3.T
    assert out3_.shape == (N3, out3)
    assert out3_.dtype == x3.dtype
    assert jnp.allclose(out3_, ref3, atol=1e-1, rtol=1e-1), "mismatch vs reference (case 3)"

    print("KERNEL_OK")
</pallas_src>

<mosaic_0001>
module attributes {stable_mosaic.version = 11 : i64} {
  func.func @_bayes_linear_kernel_bias(%arg0: i32, %arg1: i32, %arg2: i32, %arg3: memref<8x128xf32, #tpu.memory_space<vmem>>, %arg4: memref<128x128xf32, #tpu.memory_space<vmem>>, %arg5: memref<1x128xf32, #tpu.memory_space<vmem>>, %arg6: memref<8x128xf32, #tpu.memory_space<vmem>>, %arg7: memref<8x128xf32, #tpu.memory_space<vmem>>) attributes {dimension_semantics = [#tpu.dimension_semantics<parallel>, #tpu.dimension_semantics<parallel>, #tpu.dimension_semantics<arbitrary>], iteration_bounds = array<i64: 1, 1, 1>, scalar_prefetch = 0 : i64, scratch_operands = 1 : i64, tpu.core_type = #tpu.core_type<tc>, window_params = [{transform_indices = @transform_0, window_bounds = array<i64: 8, 128>}, {transform_indices = @transform_1, window_bounds = array<i64: 128, 128>}, {transform_indices = @transform_2, window_bounds = array<i64: 1, 128>}, {transform_indices = @transform_3, window_bounds = array<i64: 8, 128>}]} {
    %c0 = arith.constant 0 : index
    %c0_0 = arith.constant 0 : index
    %0 = vector.load %arg3[%c0, %c0_0] : memref<8x128xf32, #tpu.memory_space<vmem>>, vector<8x128xf32>
    %c0_1 = arith.constant 0 : index
    %c0_2 = arith.constant 0 : index
    %1 = vector.load %arg4[%c0_1, %c0_2] : memref<128x128xf32, #tpu.memory_space<vmem>>, vector<128x128xf32>
    %cst = arith.constant dense<0.000000e+00> : vector<8x128xf32>
    %2 = tpu.matmul %0, %1, %cst {dimension_numbers = #tpu.dot_dimension_numbers<[1], [0], [0], [1], [0, 0, 1, 1], [], []>} : vector<8x128xf32>, vector<128x128xf32>, vector<8x128xf32> -> vector<8x128xf32>
    %c0_i32 = arith.constant 0 : i32
    %3 = arith.cmpi eq, %arg2, %c0_i32 : i32
    %4 = arith.extui %3 : i1 to i32
    %c0_i32_3 = arith.constant 0 : i32
    %5 = arith.cmpi ne, %4, %c0_i32_3 : i32
    scf.if %5 {
      %c0_8 = arith.constant 0 : index
      %c0_9 = arith.constant 0 : index
      %12 = vector.load %arg7[%c0_8, %c0_9] : memref<8x128xf32, #tpu.memory_space<vmem>>, vector<8x128xf32>
      tpu.vector_store %arg7[%c0_8, %c0_9], %2 {strides = array<i32>} : memref<8x128xf32, #tpu.memory_space<vmem>>, vector<8x128xf32>,
    } else {
    }
    %c0_i32_4 = arith.constant 0 : i32
    %6 = arith.cmpi sgt, %arg2, %c0_i32_4 : i32
    %7 = arith.extui %6 : i1 to i32
    %c0_i32_5 = arith.constant 0 : i32
    %8 = arith.cmpi ne, %7, %c0_i32_5 : i32
    scf.if %8 {
      %c0_8 = arith.constant 0 : index
      %c0_9 = arith.constant 0 : index
      %12 = vector.load %arg7[%c0_8, %c0_9] : memref<8x128xf32, #tpu.memory_space<vmem>>, vector<8x128xf32>
      %13 = arith.addf %12, %2 : vector<8x128xf32>
      %c0_10 = arith.constant 0 : index
      %c0_11 = arith.constant 0 : index
      %14 = vector.load %arg7[%c0_10, %c0_11] : memref<8x128xf32, #tpu.memory_space<vmem>>, vector<8x128xf32>
      tpu.vector_store %arg7[%c0_10, %c0_11], %13 {strides = array<i32>} : memref<8x128xf32, #tpu.memory_space<vmem>>, vector<8x128xf32>,
    } else {
    }
    %c0_i32_6 = arith.constant 0 : i32
    %9 = arith.cmpi eq, %arg2, %c0_i32_6 : i32
    %10 = arith.extui %9 : i1 to i32
    %c0_i32_7 = arith.constant 0 : i32
    %11 = arith.cmpi ne, %10, %c0_i32_7 : i32
    scf.if %11 {
      %c0_8 = arith.constant 0 : index
      %c0_9 = arith.constant 0 : index
      %12 = vector.load %arg7[%c0_8, %c0_9] : memref<8x128xf32, #tpu.memory_space<vmem>>, vector<8x128xf32>
      %c0_10 = arith.constant 0 : index
      %c0_11 = arith.constant 0 : index
      %13 = vector.load %arg5[%c0_10, %c0_11] : memref<1x128xf32, #tpu.memory_space<vmem>>, vector<1x128xf32>
      %14 = vector.broadcast %13 : vector<1x128xf32> to vector<8x128xf32>
      %15 = arith.addf %12, %14 : vector<8x128xf32>
      %c0_12 = arith.constant 0 : index
      %c0_13 = arith.constant 0 : index
      %16 = vector.load %arg6[%c0_12, %c0_13] : memref<8x128xf32, #tpu.memory_space<vmem>>, vector<8x128xf32>
      tpu.vector_store %arg6[%c0_12, %c0_13], %15 {strides = array<i32>} : memref<8x128xf32, #tpu.memory_space<vmem>>, vector<8x128xf32>,
    } else {
    }
    return
  }
  func.func @transform_0(%arg0: i32, %arg1: i32, %arg2: i32) -> (i32, i32) {
    %c0_i32 = arith.constant 0 : i32
    return %arg0, %arg2 : i32, i32
  }
  func.func @transform_1(%arg0: i32, %arg1: i32, %arg2: i32) -> (i32, i32) {
    %c0_i32 = arith.constant 0 : i32
    return %arg2, %arg1 : i32, i32
  }
  func.func @transform_2(%arg0: i32, %arg1: i32, %arg2: i32) -> (i32, i32) {
    %c0_i32 = arith.constant 0 : i32
    %c0_i32_0 = arith.constant 0 : i32
    return %c0_i32, %arg1 : i32, i32
  }
  func.func @transform_3(%arg0: i32, %arg1: i32, %arg2: i32) -> (i32, i32) {
    %c0_i32 = arith.constant 0 : i32
    return %arg0, %arg1 : i32, i32
  }
}

</mosaic_0001>

<llo_original>
// kernel: tpu_custom_call.1
$region0: #{tpu_custom_call.1}
  #allocation0 [shape = 'u32[]', space=smem, size = 0x4, offset = 0x4, fixed_abs, tag = 'smem constant byte address 0x4 - core index']
  #allocation1 [shape = 'u32[144,128]{1,0:T(1,128)}', space=vmem, size = 0x12000, scoped, tag = 'internal scratch']
  #allocation2 [shape = 'f32[8,128]{1,0:T(8,128)}', space=vmem, size = 0x1000, scoped, tag = 'scratch operand']
  %s0 = inlined_call_operand.vmem [shape: f32[8,128], index: 0, kind: input, shape index: {}]
  %s1 = inlined_call_operand.vmem [shape: f32[128,32], index: 1, kind: input, shape index: {}]
  %s2 = inlined_call_operand.vmem [shape: f32[1,32], index: 2, kind: input, shape index: {}]
  %s3 = inlined_call_operand.hbm [shape: f32[8,32], index: 3, kind: output, shape index: {}]
  %s4 = sld [smem:[#allocation0]]
  $region34: #{tpu_custom_call.1} parent=0
    _
  %s6 = ssub.s32 1, %s4
  %s7 = scalar_select 0, %s6, %s4
  $region1: #{tpu_custom_call.1} parent=0
    #allocation3 [shape = 'u8[4096]{0}', space=vmem, size = 0x1000, scoped, tag = 'output window, operand 0, single buffered']
    #allocation4 [shape = 's32[1]{0}', space=sflag, size = 0x4, scoped, tag = 'scoped memory for tpu_custom_call.1']
    %8 = vsyncpa [#allocation4], 0
    // Predicated region
    $region2: #{tpu_custom_call.1} parent=1 // pred_check
      _
    $region3: #{tpu_custom_call.1} parent=1 // pred_check_branch
      %10 = sbr.rel (0) target = $region5
    $region4: #{tpu_custom_call.1} parent=1 // pred_region
      _
    $region5: #{tpu_custom_call.1} parent=1 // pred_fallthru
      _
    // Predicated region
    $region6: #{tpu_custom_call.1} parent=1 // pred_check
      _
    $region7: #{tpu_custom_call.1} parent=1 // pred_check_branch
      %12 = sbr.rel (0) target = $region9
    $region8: #{tpu_custom_call.1} parent=1 // pred_region
      _
    $region9: #{tpu_custom_call.1} parent=1 // pred_fallthru
      _
    // Predicated region
    $region10: #{tpu_custom_call.1} parent=1 // pred_check
      _
    $region11: #{tpu_custom_call.1} parent=1 // pred_check_branch
      %14 = sbr.rel (0) target = $region13
    $region12: #{tpu_custom_call.1} parent=1 // pred_region
      _
    $region13: #{tpu_custom_call.1} parent=1 // pred_fallthru
      _
    %v15 = vld [vmem:[%s0] sm:$0xff]
    %v16 = vld [vmem:[%s1] sm:$0xff]
    %v17 = vld [vmem:[%s1 + $0x8] sm:$0xff]
    %v18 = vld [vmem:[%s1 + $0x10] sm:$0xff]
    %v19 = vld [vmem:[%s1 + $0x18] sm:$0xff]
    %v20 = vld [vmem:[%s1 + $0x20] sm:$0xff]
    %v21 = vld [vmem:[%s1 + $0x28] sm:$0xff]
    %v22 = vld [vmem:[%s1 + $0x30] sm:$0xff]
    %v23 = vld [vmem:[%s1 + $0x38] sm:$0xff]
    %v24 = vld [vmem:[%s1 + $0x40] sm:$0xff]
    %v25 = vld [vmem:[%s1 + $0x48] sm:$0xff]
    %v26 = vld [vmem:[%s1 + $0x50] sm:$0xff]
    %v27 = vld [vmem:[%s1 + $0x58] sm:$0xff]
    %v28 = vld [vmem:[%s1 + $0x60] sm:$0xff]
    %v29 = vld [vmem:[%s1 + $0x68] sm:$0xff]
    %v30 = vld [vmem:[%s1 + $0x70] sm:$0xff]
    %v31 = vld [vmem:[%s1 + $0x78] sm:$0xff]
    %32 = vmatprep.subr.mxu0 0.0
    %33 = vmatpush1.msra.mxu0 %v16
    %34 = vmatprep.subr.mxu0 0.0
    %35 = vmatpush1.msra.mxu0 %v17
    %36 = vmatprep.subr.mxu0 0.0
    %37 = vmatpush1.msra.mxu0 %v18
    %38 = vmatprep.subr.mxu0 0.0
    %39 = vmatpush1.msra.mxu0 %v19
    %40 = vmatprep.subr.mxu0 0.0
    %41 = vmatpush1.msra.mxu0 %v20
    %42 = vmatprep.subr.mxu0 0.0
    %43 = vmatpush1.msra.mxu0 %v21
    %44 = vmatprep.subr.mxu0 0.0
    %45 = vmatpush1.msra.mxu0 %v22
    %46 = vmatprep.subr.mxu0 0.0
    %47 = vmatpush1.msra.mxu0 %v23
    %48 = vmatprep.subr.mxu0 0.0
    %49 = vmatpush1.msra.mxu0 %v24
    %50 = vmatprep.subr.mxu0 0.0
    %51 = vmatpush1.msra.mxu0 %v25
    %52 = vmatprep.subr.mxu0 0.0
    %53 = vmatpush1.msra.mxu0 %v26
    %54 = vmatprep.subr.mxu0 0.0
    %55 = vmatpush1.msra.mxu0 %v27
    %56 = vmatprep.subr.mxu0 0.0
    %57 = vmatpush1.msra.mxu0 %v28
    %58 = vmatprep.subr.mxu0 0.0
    %59 = vmatpush1.msra.mxu0 %v29
    %60 = vmatprep.subr.mxu0 0.0
    %61 = vmatpush1.msra.mxu0 %v30
    %62 = vmatprep.subr.mxu0 0.0
    %63 = vmatpush1.msra.mxu0 %v31
    %64 = vmatprep.subr.mxu0 0.0
    %65 = vmatpush1.msra.mxu0 0.0
    %66 = vmatprep.subr.mxu0 0.0
    %67 = vmatpush1.msra.mxu0 0.0
    %68 = vmatprep.subr.mxu0 0.0
    %69 = vmatpush1.msra.mxu0 0.0
    %70 = vmatprep.subr.mxu0 0.0
    %71 = vmatpush1.msra.mxu0 0.0
    %72 = vmatprep.subr.mxu0 0.0
    %73 = vmatpush1.msra.mxu0 0.0
    %74 = vmatprep.subr.mxu0 0.0
    %75 = vmatpush1.msra.mxu0 0.0
    %76 = vmatprep.subr.mxu0 0.0
    %77 = vmatpush1.msra.mxu0 0.0
    %78 = vmatprep.subr.mxu0 0.0
    %79 = vmatpush1.msra.mxu0 0.0
    %80 = vmatprep.subr.mxu0 0.0
    %81 = vmatpush1.msra.mxu0 0.0
    %82 = vmatprep.subr.mxu0 0.0
    %83 = vmatpush1.msra.mxu0 0.0
    %84 = vmatprep.subr.mxu0 0.0
    %85 = vmatpush1.msra.mxu0 0.0
    %86 = vmatprep.subr.mxu0 0.0
    %87 = vmatpush1.msra.mxu0 0.0
    %88 = vmatprep.subr.mxu0 0.0
    %89 = vmatpush1.msra.mxu0 0.0
    %90 = vmatprep.subr.mxu0 0.0
    %91 = vmatpush1.msra.mxu0 0.0
    %92 = vmatprep.subr.mxu0 0.0
    %93 = vmatpush1.msra.mxu0 0.0
    %94 = vmatprep.subr.mxu0 0.0
    %95 = vmatpush1.msra.mxu0 0.0
    %96 = vmatprep.mubr.f32.mxu0 0.0
    %97 = vmatmul.mubr.f32.gmra.mrb[0].mxu0 %v15
    %v98 = vpop.f32.mrb[0].mxu0
    %v99 = vadd.f32 0.0, %v98
    %v100 = vpop.f32.mrb[0].mxu0
    %101 = vdwg.mxu0
    %p102 = scmp.eq.s32.totalorder 0, 0
    // Predicated region
    $region14: #{tpu_custom_call.1} parent=1 // pred_check
      %p103 = pneg %p102
    $region15: #{tpu_custom_call.1} parent=1 // pred_check_branch
      %105 = sbr.rel (%p103) target = $region17
    $region16: #{tpu_custom_call.1} parent=1 // pred_region
      %106 = vst [vmem:[#allocation2] sm:$0xff] %v99
    $region17: #{tpu_custom_call.1} parent=1 // pred_fallthru
      _
    %p107 = scmp.gt.s32.totalorder 0, 0
    // Predicated region
    $region18: #{tpu_custom_call.1} parent=1 // pred_check
      %p108 = pneg %p107
    $region19: #{tpu_custom_call.1} parent=1 // pred_check_branch
      %110 = sbr.rel (%p108) target = $region21
    $region20: #{tpu_custom_call.1} parent=1 // pred_region
      %v111 = vld [vmem:[#allocation2] sm:$0xff]
      %v112 = vadd.f32 %v111, %v99
      %113 = vst [vmem:[#allocation2] sm:$0xff] %v112
    $region21: #{tpu_custom_call.1} parent=1 // pred_fallthru
      _
    // Predicated region
    $region22: #{tpu_custom_call.1} parent=1 // pred_check
      %p114 = pneg %p102
    $region23: #{tpu_custom_call.1} parent=1 // pred_check_branch
      %116 = sbr.rel (%p114) target = $region25
    $region24: #{tpu_custom_call.1} parent=1 // pred_region
      %v117 = vld [vmem:[#allocation2] sm:$0xff]
      %v118 = vld [vmem:[%s2] sm:$0x1]
      %v120 = vlaneseq
      %v121 = vshrl.u32 %v120, 7
      %v122 = vsub.s32 0, %v121
      %v123 = vrot.slane %v118, %v122
      %v125 = vadd.f32 %v117, %v123
      %126 = vst [vmem:[#allocation3] sm:$0xff] %v125
    $region25: #{tpu_custom_call.1} parent=1 // pred_fallthru
      _
    // Predicated region
    $region26: #{tpu_custom_call.1} parent=1 // pred_check
      _
    $region27: #{tpu_custom_call.1} parent=1 // pred_check_branch
      %128 = sbr.rel (0) target = $region29
    $region28: #{tpu_custom_call.1} parent=1 // pred_region
      %s130 = ssub.s32 128, 128
      %131 = vsyncadd [#allocation4], %s130
      %s133 = sshll.u32 [#allocation3], 4
      %s134 = int_to_ptr.vmem [resolvable:$true] %s133
      %136 = dma.vmem_to_hbm [thread:$0]  %s134, 128, %s3, [#allocation4]
    $region29: #{tpu_custom_call.1} parent=1 // pred_fallthru
      _
    // Predicated region
    $region30: #{tpu_custom_call.1} parent=1 // pred_check
      _
    $region31: #{tpu_custom_call.1} parent=1 // pred_check_branch
      %138 = sbr.rel (0) target = $region33
    $region32: #{tpu_custom_call.1} parent=1 // pred_region
      %139 = dma.done [#allocation4], 128
    $region33: #{tpu_custom_call.1} parent=1 // pred_fallthru
      _
    %140 = vsyncpa [#allocation4], 1

</llo_original>
